<compile_context>
chip_gen: v5e
topology: v5e:2x2
jax: 0.10.0
libtpu: 0.0.40
codegen_flags: <defaults>
</compile_context>

<pallas_src>
import functools

import jax
import jax.numpy as jnp
from jax.experimental import pallas as pl
from jax.experimental.pallas import tpu as pltpu


def _gru_memory_updater_kernel(
    dt_ref,        # (TN, 1)    f32   ts - mem_ts
    msg_ref,       # (TN, Dmsg) bf16  mem_input (2*dim_memory + dim_edge)
    mem_ref,       # (TN, H)    bf16  memory (GRU hidden state)
    hnode_ref,     # (TN, Dn)   bf16  node features b.srcdata['h']
    tw_ref,        # (1, Dt)    f32   TimeEncode weight
    tb_ref,        # (1, Dt)    f32   TimeEncode bias
    wgm_ref,       # (Dmsg, 4H) bf16  gate weights for msg rows   [r|z|n_x|0 ]
    wgt_ref,       # (Dt,   4H) bf16  gate weights for time rows  [r|z|n_x|0 ]
    wgh_ref,       # (H,    4H) bf16  gate weights for hidden rows[r|z|0 |n_h]
    bg_ref,        # (1, 4H)    f32   folded gate biases
    wproj_ref,     # (Dn, H)    bf16  node_feat_proj weight^T
    bproj_ref,     # (1, H)     f32   node_feat_proj bias
    new_mem_ref,   # out: (TN, H) bf16 updated memory (aliased onto mem)
    h_out_ref,     # out: (TN, H) bf16 updated node embedding h
):
  f32 = jnp.float32
  H = mem_ref.shape[-1]

  # --- TimeEncode: cos(dt * w + b), (TN,1)*(1,Dt) -> (TN,Dt), f32 ---
  time_feat = jnp.cos(dt_ref[...] * tw_ref[...] + tb_ref[...])

  # --- Fused GRU gate pre-activations: one lane-dense (TN, 4H) slab.
  # Columns = [ r_pre | z_pre | n_x | n_h ]; the input-path and hidden-path
  # contributions to r/z are summed directly in the f32 accumulation.
  h_bf = mem_ref[...]
  g = (jnp.dot(msg_ref[...], wgm_ref[...], preferred_element_type=f32)
       + jnp.dot(time_feat.astype(wgt_ref.dtype), wgt_ref[...],
                 preferred_element_type=f32)
       + jnp.dot(h_bf, wgh_ref[...], preferred_element_type=f32)
       + bg_ref[...])

  # --- PyTorch GRUCell gate order [r, z, n], all gate math in f32 ---
  r = jax.nn.sigmoid(g[:, 0:H])
  z = jax.nn.sigmoid(g[:, H:2 * H])
  n = jnp.tanh(g[:, 2 * H:3 * H] + r * g[:, 3 * H:4 * H])
  h = h_bf.astype(f32)
  new_h = (1.0 - z) * n + z * h

  new_mem_ref[...] = new_h.astype(new_mem_ref.dtype)

  # --- h = updated_memory + node_feat_proj(h_node)  (dim_node != dim_embed) ---
  proj = (jnp.dot(hnode_ref[...], wproj_ref[...], preferred_element_type=f32)
          + bproj_ref[...])
  h_out_ref[...] = (new_h + proj).astype(h_out_ref.dtype)


def pack_gru_params(w_ih, w_hh, b_ih, b_hh, w_proj, b_proj, time_w, time_b,
                    dim_message):
  """One-time packing of GRU weights into the fused [r|z|n_x|n_h] layout.

  All weights are stored transposed, i.e. (in_features, out_features):
    w_ih: (Dmsg + Dt, 3H), w_hh: (H, 3H), b_*: (1, 3H), w_proj: (Dn, H).
  """
  H = w_hh.shape[0]
  bf16 = jnp.bfloat16

  def x_cols(w):   # input-path rows contribute to r, z, n_x
    rows = w.shape[0]
    return jnp.concatenate(
        [w[:, :2 * H], w[:, 2 * H:], jnp.zeros((rows, H), w.dtype)], axis=1)

  def h_cols(w):   # hidden-path rows contribute to r, z, n_h
    rows = w.shape[0]
    return jnp.concatenate(
        [w[:, :2 * H], jnp.zeros((rows, H), w.dtype), w[:, 2 * H:]], axis=1)

  b_gate = jnp.concatenate(
      [b_ih[:, :2 * H] + b_hh[:, :2 * H], b_ih[:, 2 * H:], b_hh[:, 2 * H:]],
      axis=1).astype(jnp.float32)

  return dict(
      time_w=time_w.astype(jnp.float32),
      time_b=time_b.astype(jnp.float32),
      w_gate_msg=x_cols(w_ih[:dim_message]).astype(bf16),
      w_gate_time=x_cols(w_ih[dim_message:]).astype(bf16),
      w_gate_h=h_cols(w_hh).astype(bf16),
      b_gate=b_gate,
      w_proj=w_proj.astype(bf16),
      b_proj=b_proj.astype(jnp.float32))


@functools.partial(jax.jit, static_argnames=("tile_n",), donate_argnums=(2,))
def gru_memory_updater(dt, mem_input, mem, h_node, params, *, tile_n=1024):
  """Runs the fused Pallas kernel. Returns (updated_memory, updated_h), bf16."""
  N, dmsg = mem_input.shape
  H = mem.shape[-1]
  dn = h_node.shape[-1]

  tn = min(tile_n, N)             # == N (full dim) when N is small
  grid = (pl.cdiv(N, tn),)

  def rows(d):                    # row-streamed, pipelined over the grid
    return pl.BlockSpec((tn, d), lambda i: (i, 0))

  def resident(a):                # VMEM-resident across all grid steps
    return pl.BlockSpec(a.shape, lambda i: (0, 0))

  args = (
      dt.astype(jnp.float32),
      mem_input.astype(jnp.bfloat16),
      mem.astype(jnp.bfloat16),
      h_node.astype(jnp.bfloat16),
      params['time_w'], params['time_b'],
      params['w_gate_msg'], params['w_gate_time'], params['w_gate_h'],
      params['b_gate'],
      params['w_proj'], params['b_proj'],
  )
  in_specs = ([rows(1), rows(dmsg), rows(H), rows(dn)]
              + [resident(a) for a in args[4:]])
  out_specs = (rows(H), rows(H))
  out_shape = (jax.ShapeDtypeStruct((N, H), jnp.bfloat16),
               jax.ShapeDtypeStruct((N, H), jnp.bfloat16))

  new_mem, h_out = pl.pallas_call(
      _gru_memory_updater_kernel,
      grid=grid,
      in_specs=in_specs,
      out_specs=out_specs,
      out_shape=out_shape,
      input_output_aliases={2: 0},      # memory is updated in place
      compiler_params=pltpu.CompilerParams(
          dimension_semantics=("parallel",)),
  )(*args)
  return new_mem, h_out


if __name__ == "__main__":
  key = jax.random.PRNGKey(0)

  # Module hyper-params (small; dim_node > 0 and dim_node != dim_embed so the
  # node_feat_proj branch is exercised).
  dim_node, dim_edge, dim_time, dim_embed, dim_memory = 12, 16, 8, 32, 32
  dim_message = 2 * dim_memory + dim_edge          # 80
  gru_in = dim_message + dim_time                  # 88
  N, num_dst = 16, 8                               # src nodes, dst nodes

  ks = jax.random.split(key, 12)
  mem_input = jax.random.normal(ks[0], (N, dim_message)).astype(jnp.bfloat16)
  mem = jax.random.normal(ks[1], (N, dim_memory)).astype(jnp.bfloat16)
  h_node = jax.random.normal(ks[2], (N, dim_node)).astype(jnp.bfloat16)
  ts = jax.random.uniform(ks[3], (N,), jnp.float32, 0.0, 100.0)
  mem_ts = ts - jax.random.uniform(ks[4], (N,), jnp.float32, 0.0, 10.0)
  node_ids = jnp.arange(N, dtype=jnp.int32)

  # Deterministic parameter init (synthetic; mimics GRUCell uniform init).
  bound = 1.0 / (dim_memory ** 0.5)
  def u(k, shape):
    return jax.random.uniform(k, shape, jnp.float32, -bound, bound)

  w_ih = u(ks[5], (gru_in, 3 * dim_memory))        # GRU weight_ih, transposed
  w_hh = u(ks[6], (dim_memory, 3 * dim_memory))    # GRU weight_hh, transposed
  b_ih = u(ks[7], (1, 3 * dim_memory))
  b_hh = u(ks[8], (1, 3 * dim_memory))
  w_proj = u(ks[9], (dim_node, dim_memory))        # node_feat_proj, transposed
  b_proj = u(ks[10], (1, dim_memory))
  # TGN TimeEncode init: w = 1 / 10 ** linspace(0, 9, dim_time), b = 0
  time_w = (1.0 / (10.0 ** jnp.linspace(0.0, 9.0, dim_time))
            ).reshape(1, dim_time).astype(jnp.float32)
  time_b = jnp.zeros((1, dim_time), jnp.float32)

  params = pack_gru_params(w_ih, w_hh, b_ih, b_hh, w_proj, b_proj,
                           time_w, time_b, dim_message)

  dt = (ts - mem_ts).reshape(N, 1).astype(jnp.float32)

  # Pure-JAX reference (standard PyTorch GRUCell formulation) computed BEFORE
  # the kernel call, because `mem` is donated / overwritten in place.
  f32 = jnp.float32
  H = dim_memory
  msg32, mem32, hn32 = (mem_input.astype(f32), mem.astype(f32),
                        h_node.astype(f32))
  wih32 = w_ih.astype(jnp.bfloat16).astype(f32)
  whh32 = w_hh.astype(jnp.bfloat16).astype(f32)
  wproj32 = w_proj.astype(jnp.bfloat16).astype(f32)
  t_feat = jnp.cos(dt * time_w + time_b)
  gx = jnp.concatenate([msg32, t_feat], axis=1) @ wih32 + b_ih
  gh = mem32 @ whh32 + b_hh
  r_ref = jax.nn.sigmoid(gx[:, :H] + gh[:, :H])
  z_ref = jax.nn.sigmoid(gx[:, H:2 * H] + gh[:, H:2 * H])
  n_ref = jnp.tanh(gx[:, 2 * H:] + r_ref * gh[:, 2 * H:])
  ref_mem = (1.0 - z_ref) * n_ref + z_ref * mem32
  ref_h = ref_mem + hn32 @ wproj32 + b_proj

  new_mem, h_out = gru_memory_updater(dt, mem_input, mem, h_node, params)

  # Glue matching the module's return dict / srcdata['h'] update.
  # TODO(synk): DGLBlock graph container / .clone().detach() device moves have
  # no Pallas equivalent; plain array slicing stands in for them.
  result = {
      'last_updated_nid': node_ids[:num_dst],
      'last_updated_memory': new_mem[:num_dst],
      'last_updated_ts': ts[:num_dst],
      'h': h_out,
  }
  jax.block_until_ready(result)

  err_mem = float(jnp.max(jnp.abs(new_mem.astype(f32) - ref_mem)))
  err_h = float(jnp.max(jnp.abs(h_out.astype(f32) - ref_h)))
  assert err_mem < 5e-2 and err_h < 5e-2, (err_mem, err_h)
  print("KERNEL_OK")
</pallas_src>

<mosaic_0001>
module attributes {stable_mosaic.version = 11 : i64} {
  func.func @_gru_memory_updater_kernel(%arg0: i32, %arg1: memref<16x1xf32, #tpu.memory_space<vmem>>, %arg2: memref<16x80xbf16, #tpu.memory_space<vmem>>, %arg3: memref<16x32xbf16, #tpu.memory_space<vmem>>, %arg4: memref<16x12xbf16, #tpu.memory_space<vmem>>, %arg5: memref<1x8xf32, #tpu.memory_space<vmem>>, %arg6: memref<1x8xf32, #tpu.memory_space<vmem>>, %arg7: memref<80x128xbf16, #tpu.memory_space<vmem>>, %arg8: memref<8x128xbf16, #tpu.memory_space<vmem>>, %arg9: memref<32x128xbf16, #tpu.memory_space<vmem>>, %arg10: memref<1x128xf32, #tpu.memory_space<vmem>>, %arg11: memref<12x32xbf16, #tpu.memory_space<vmem>>, %arg12: memref<1x32xf32, #tpu.memory_space<vmem>>, %arg13: memref<16x32xbf16, #tpu.memory_space<vmem>>, %arg14: memref<16x32xbf16, #tpu.memory_space<vmem>>) attributes {dimension_semantics = [#tpu.dimension_semantics<parallel>], iteration_bounds = array<i64: 1>, scalar_prefetch = 0 : i64, scratch_operands = 0 : i64, tpu.core_type = #tpu.core_type<tc>, window_params = [{transform_indices = @transform_0, window_bounds = array<i64: 16, 1>}, {transform_indices = @transform_1, window_bounds = array<i64: 16, 80>}, {transform_indices = @transform_2, window_bounds = array<i64: 16, 32>}, {transform_indices = @transform_3, window_bounds = array<i64: 16, 12>}, {pipeline_mode = #tpu.pipeline_mode<synchronous>, transform_indices = @transform_4, window_bounds = array<i64: 1, 8>}, {pipeline_mode = #tpu.pipeline_mode<synchronous>, transform_indices = @transform_5, window_bounds = array<i64: 1, 8>}, {pipeline_mode = #tpu.pipeline_mode<synchronous>, transform_indices = @transform_6, window_bounds = array<i64: 80, 128>}, {pipeline_mode = #tpu.pipeline_mode<synchronous>, transform_indices = @transform_7, window_bounds = array<i64: 8, 128>}, {pipeline_mode = #tpu.pipeline_mode<synchronous>, transform_indices = @transform_8, window_bounds = array<i64: 32, 128>}, {pipeline_mode = #tpu.pipeline_mode<synchronous>, transform_indices = @transform_9, window_bounds = array<i64: 1, 128>}, {pipeline_mode = #tpu.pipeline_mode<synchronous>, transform_indices = @transform_10, window_bounds = array<i64: 12, 32>}, {pipeline_mode = #tpu.pipeline_mode<synchronous>, transform_indices = @transform_11, window_bounds = array<i64: 1, 32>}, {transform_indices = @transform_12, window_bounds = array<i64: 16, 32>}, {transform_indices = @transform_13, window_bounds = array<i64: 16, 32>}]} {
    %c0 = arith.constant 0 : index
    %c0_0 = arith.constant 0 : index
    %0 = vector.load %arg1[%c0, %c0_0] : memref<16x1xf32, #tpu.memory_space<vmem>>, vector<16x1xf32>
    %c0_1 = arith.constant 0 : index
    %c0_2 = arith.constant 0 : index
    %1 = vector.load %arg5[%c0_1, %c0_2] : memref<1x8xf32, #tpu.memory_space<vmem>>, vector<1x8xf32>
    %2 = vector.broadcast %0 : vector<16x1xf32> to vector<16x8xf32>
    %3 = vector.broadcast %1 : vector<1x8xf32> to vector<16x8xf32>
    %4 = arith.mulf %2, %3 : vector<16x8xf32>
    %c0_3 = arith.constant 0 : index
    %c0_4 = arith.constant 0 : index
    %5 = vector.load %arg6[%c0_3, %c0_4] : memref<1x8xf32, #tpu.memory_space<vmem>>, vector<1x8xf32>
    %6 = vector.broadcast %5 : vector<1x8xf32> to vector<16x8xf32>
    %7 = arith.addf %4, %6 : vector<16x8xf32>
    %8 = math.cos %7 : vector<16x8xf32>
    %c0_5 = arith.constant 0 : index
    %c0_6 = arith.constant 0 : index
    %9 = vector.load %arg3[%c0_5, %c0_6] : memref<16x32xbf16, #tpu.memory_space<vmem>>, vector<16x32xbf16>
    %c0_7 = arith.constant 0 : index
    %c0_8 = arith.constant 0 : index
    %10 = vector.load %arg2[%c0_7, %c0_8] : memref<16x80xbf16, #tpu.memory_space<vmem>>, vector<16x80xbf16>
    %c0_9 = arith.constant 0 : index
    %c0_10 = arith.constant 0 : index
    %11 = vector.load %arg7[%c0_9, %c0_10] : memref<80x128xbf16, #tpu.memory_space<vmem>>, vector<80x128xbf16>
    %cst = arith.constant dense<0.000000e+00> : vector<16x128xf32>
    %12 = tpu.matmul %10, %11, %cst {dimension_numbers = #tpu.dot_dimension_numbers<[1], [0], [0], [1], [0, 0, 1, 1], [], []>} : vector<16x80xbf16>, vector<80x128xbf16>, vector<16x128xf32> -> vector<16x128xf32>
    %13 = arith.truncf %8 : vector<16x8xf32> to vector<16x8xbf16>
    %c0_11 = arith.constant 0 : index
    %c0_12 = arith.constant 0 : index
    %14 = vector.load %arg8[%c0_11, %c0_12] : memref<8x128xbf16, #tpu.memory_space<vmem>>, vector<8x128xbf16>
    %cst_13 = arith.constant dense<0.000000e+00> : vector<16x128xf32>
    %15 = tpu.matmul %13, %14, %cst_13 {dimension_numbers = #tpu.dot_dimension_numbers<[1], [0], [0], [1], [0, 0, 1, 1], [], []>} : vector<16x8xbf16>, vector<8x128xbf16>, vector<16x128xf32> -> vector<16x128xf32>
    %16 = arith.addf %12, %15 : vector<16x128xf32>
    %c0_14 = arith.constant 0 : index
    %c0_15 = arith.constant 0 : index
    %17 = vector.load %arg9[%c0_14, %c0_15] : memref<32x128xbf16, #tpu.memory_space<vmem>>, vector<32x128xbf16>
    %cst_16 = arith.constant dense<0.000000e+00> : vector<16x128xf32>
    %18 = tpu.matmul %9, %17, %cst_16 {dimension_numbers = #tpu.dot_dimension_numbers<[1], [0], [0], [1], [0, 0, 1, 1], [], []>} : vector<16x32xbf16>, vector<32x128xbf16>, vector<16x128xf32> -> vector<16x128xf32>
    %19 = arith.addf %16, %18 : vector<16x128xf32>
    %c0_17 = arith.constant 0 : index
    %c0_18 = arith.constant 0 : index
    %20 = vector.load %arg10[%c0_17, %c0_18] : memref<1x128xf32, #tpu.memory_space<vmem>>, vector<1x128xf32>
    %21 = vector.broadcast %20 : vector<1x128xf32> to vector<16x128xf32>
    %22 = arith.addf %19, %21 : vector<16x128xf32>
    %23 = vector.extract_strided_slice %22 {offsets = [0, 0], sizes = [16, 32], strides = [1, 1]} : vector<16x128xf32> to vector<16x32xf32>
    %24 = arith.negf %23 : vector<16x32xf32>
    %25 = math.exp %24 : vector<16x32xf32>
    %cst_19 = arith.constant 1.000000e+00 : f32
    %26 = vector.broadcast %cst_19 : f32 to vector<16x32xf32>
    %27 = arith.addf %26, %25 : vector<16x32xf32>
    %28 = arith.divf %26, %27 : vector<16x32xf32>
    %29 = vector.extract_strided_slice %22 {offsets = [0, 32], sizes = [16, 32], strides = [1, 1]} : vector<16x128xf32> to vector<16x32xf32>
    %30 = arith.negf %29 : vector<16x32xf32>
    %31 = math.exp %30 : vector<16x32xf32>
    %cst_20 = arith.constant 1.000000e+00 : f32
    %32 = vector.broadcast %cst_20 : f32 to vector<16x32xf32>
    %33 = arith.addf %32, %31 : vector<16x32xf32>
    %34 = arith.divf %32, %33 : vector<16x32xf32>
    %35 = vector.extract_strided_slice %22 {offsets = [0, 64], sizes = [16, 32], strides = [1, 1]} : vector<16x128xf32> to vector<16x32xf32>
    %36 = vector.extract_strided_slice %22 {offsets = [0, 96], sizes = [16, 32], strides = [1, 1]} : vector<16x128xf32> to vector<16x32xf32>
    %37 = arith.mulf %28, %36 : vector<16x32xf32>
    %38 = arith.addf %35, %37 : vector<16x32xf32>
    %39 = math.tanh %38 : vector<16x32xf32>
    %40 = arith.extf %9 : vector<16x32xbf16> to vector<16x32xf32>
    %cst_21 = arith.constant 1.000000e+00 : f32
    %41 = vector.broadcast %cst_21 : f32 to vector<16x32xf32>
    %42 = arith.subf %41, %34 : vector<16x32xf32>
    %43 = arith.mulf %42, %39 : vector<16x32xf32>
    %44 = arith.mulf %34, %40 : vector<16x32xf32>
    %45 = arith.addf %43, %44 : vector<16x32xf32>
    %46 = arith.truncf %45 : vector<16x32xf32> to vector<16x32xbf16>
    %c0_22 = arith.constant 0 : index
    %c0_23 = arith.constant 0 : index
    %47 = vector.load %arg13[%c0_22, %c0_23] : memref<16x32xbf16, #tpu.memory_space<vmem>>, vector<16x32xbf16>
    tpu.vector_store %arg13[%c0_22, %c0_23], %46 {strides = array<i32>} : memref<16x32xbf16, #tpu.memory_space<vmem>>, vector<16x32xbf16>,
    %c0_24 = arith.constant 0 : index
    %c0_25 = arith.constant 0 : index
    %48 = vector.load %arg4[%c0_24, %c0_25] : memref<16x12xbf16, #tpu.memory_space<vmem>>, vector<16x12xbf16>
    %c0_26 = arith.constant 0 : index
    %c0_27 = arith.constant 0 : index
    %49 = vector.load %arg11[%c0_26, %c0_27] : memref<12x32xbf16, #tpu.memory_space<vmem>>, vector<12x32xbf16>
    %cst_28 = arith.constant dense<0.000000e+00> : vector<16x32xf32>
    %50 = tpu.matmul %48, %49, %cst_28 {dimension_numbers = #tpu.dot_dimension_numbers<[1], [0], [0], [1], [0, 0, 1, 1], [], []>} : vector<16x12xbf16>, vector<12x32xbf16>, vector<16x32xf32> -> vector<16x32xf32>
    %c0_29 = arith.constant 0 : index
    %c0_30 = arith.constant 0 : index
    %51 = vector.load %arg12[%c0_29, %c0_30] : memref<1x32xf32, #tpu.memory_space<vmem>>, vector<1x32xf32>
    %52 = vector.broadcast %51 : vector<1x32xf32> to vector<16x32xf32>
    %53 = arith.addf %50, %52 : vector<16x32xf32>
    %54 = arith.addf %45, %53 : vector<16x32xf32>
    %55 = arith.truncf %54 : vector<16x32xf32> to vector<16x32xbf16>
    %c0_31 = arith.constant 0 : index
    %c0_32 = arith.constant 0 : index
    %56 = vector.load %arg14[%c0_31, %c0_32] : memref<16x32xbf16, #tpu.memory_space<vmem>>, vector<16x32xbf16>
    tpu.vector_store %arg14[%c0_31, %c0_32], %55 {strides = array<i32>} : memref<16x32xbf16, #tpu.memory_space<vmem>>, vector<16x32xbf16>,
    return
  }
  func.func @transform_0(%arg0: i32) -> (i32, i32) {
    %c0_i32 = arith.constant 0 : i32
    %c0_i32_0 = arith.constant 0 : i32
    return %arg0, %c0_i32 : i32, i32
  }
  func.func @transform_1(%arg0: i32) -> (i32, i32) {
    %c0_i32 = arith.constant 0 : i32
    %c0_i32_0 = arith.constant 0 : i32
    return %arg0, %c0_i32 : i32, i32
  }
  func.func @transform_2(%arg0: i32) -> (i32, i32) {
    %c0_i32 = arith.constant 0 : i32
    %c0_i32_0 = arith.constant 0 : i32
    return %arg0, %c0_i32 : i32, i32
  }
  func.func @transform_3(%arg0: i32) -> (i32, i32) {
    %c0_i32 = arith.constant 0 : i32
    %c0_i32_0 = arith.constant 0 : i32
    return %arg0, %c0_i32 : i32, i32
  }
  func.func @transform_4(%arg0: i32) -> (i32, i32) {
    %c0_i32 = arith.constant 0 : i32
    %c0_i32_0 = arith.constant 0 : i32
    %c0_i32_1 = arith.constant 0 : i32
    return %c0_i32, %c0_i32_0 : i32, i32
  }
  func.func @transform_5(%arg0: i32) -> (i32, i32) {
    %c0_i32 = arith.constant 0 : i32
    %c0_i32_0 = arith.constant 0 : i32
    %c0_i32_1 = arith.constant 0 : i32
    return %c0_i32, %c0_i32_0 : i32, i32
  }
  func.func @transform_6(%arg0: i32) -> (i32, i32) {
    %c0_i32 = arith.constant 0 : i32
    %c0_i32_0 = arith.constant 0 : i32
    %c0_i32_1 = arith.constant 0 : i32
    return %c0_i32, %c0_i32_0 : i32, i32
  }
  func.func @transform_7(%arg0: i32) -> (i32, i32) {
    %c0_i32 = arith.constant 0 : i32
    %c0_i32_0 = arith.constant 0 : i32
    %c0_i32_1 = arith.constant 0 : i32
    return %c0_i32, %c0_i32_0 : i32, i32
  }
  func.func @transform_8(%arg0: i32) -> (i32, i32) {
    %c0_i32 = arith.constant 0 : i32
    %c0_i32_0 = arith.constant 0 : i32
    %c0_i32_1 = arith.constant 0 : i32
    return %c0_i32, %c0_i32_0 : i32, i32
  }
  func.func @transform_9(%arg0: i32) -> (i32, i32) {
    %c0_i32 = arith.constant 0 : i32
    %c0_i32_0 = arith.constant 0 : i32
    %c0_i32_1 = arith.constant 0 : i32
    return %c0_i32, %c0_i32_0 : i32, i32
  }
  func.func @transform_10(%arg0: i32) -> (i32, i32) {
    %c0_i32 = arith.constant 0 : i32
    %c0_i32_0 = arith.constant 0 : i32
    %c0_i32_1 = arith.constant 0 : i32
    return %c0_i32, %c0_i32_0 : i32, i32
  }
  func.func @transform_11(%arg0: i32) -> (i32, i32) {
    %c0_i32 = arith.constant 0 : i32
    %c0_i32_0 = arith.constant 0 : i32
    %c0_i32_1 = arith.constant 0 : i32
    return %c0_i32, %c0_i32_0 : i32, i32
  }
  func.func @transform_12(%arg0: i32) -> (i32, i32) {
    %c0_i32 = arith.constant 0 : i32
    %c0_i32_0 = arith.constant 0 : i32
    return %arg0, %c0_i32 : i32, i32
  }
  func.func @transform_13(%arg0: i32) -> (i32, i32) {
    %c0_i32 = arith.constant 0 : i32
    %c0_i32_0 = arith.constant 0 : i32
    return %arg0, %c0_i32 : i32, i32
  }
}

</mosaic_0001>

<llo_original>
// kernel: gru_memory_updater.1
$region0: #{gru_memory_updater.1}
  #allocation0 [shape = 'u32[]', space=smem, size = 0x4, offset = 0x4, fixed_abs, tag = 'smem constant byte address 0x4 - core index']
  #allocation1 [shape = 'u32[72,128]{1,0:T(1,128)}', space=vmem, size = 0x9000, scoped, tag = 'internal scratch']
  %s0 = inlined_call_operand.vmem [shape: f32[16,1], index: 0, kind: input, shape index: {}]
  %s1 = inlined_call_operand.vmem [shape: bf16[16,80], index: 1, kind: input, shape index: {}]
  %s2 = inlined_call_operand.hbm [shape: bf16[16,32], index: 2, kind: input, shape index: {}, may-alias: {2,12}]
  %s3 = inlined_call_operand.hbm [shape: bf16[16,12], index: 3, kind: input, shape index: {}]
  %s4 = inlined_call_operand.hbm [shape: f32[1,8], index: 4, kind: input, shape index: {}]
  %s5 = inlined_call_operand.hbm [shape: f32[1,8], index: 5, kind: input, shape index: {}]
  %s6 = inlined_call_operand.hbm [shape: bf16[80,128], index: 6, kind: input, shape index: {}]
  %s7 = inlined_call_operand.hbm [shape: bf16[8,128], index: 7, kind: input, shape index: {}]
  %s8 = inlined_call_operand.vmem [shape: bf16[32,128], index: 8, kind: input, shape index: {}]
  %s9 = inlined_call_operand.hbm [shape: f32[1,128], index: 9, kind: input, shape index: {}]
  %s10 = inlined_call_operand.hbm [shape: bf16[12,32], index: 10, kind: input, shape index: {}]
  %s11 = inlined_call_operand.hbm [shape: f32[1,32], index: 11, kind: input, shape index: {}]
  %s12 = inlined_call_operand.hbm [shape: bf16[16,32], index: 12, kind: output, shape index: {0}, may-alias: {2,12}]
  %s13 = inlined_call_operand.hbm [shape: bf16[16,32], index: 13, kind: output, shape index: {1}]
  %14 = xla_tuple %s12, %s13
  %s15 = sld [smem:[#allocation0]]
  $region102: #{gru_memory_updater.1} parent=0
    _
  %s17 = ssub.s32 1, %s15
  %s18 = scalar_select 0, %s17, %s15
  $region1: #{gru_memory_updater.1} parent=0
    #allocation2 [shape = 'u8[4096]{0}', space=vmem, size = 0x1000, scoped, tag = 'input window, operand 2, single buffered']
    #allocation3 [shape = 's32[1]{0}', space=sflag, size = 0x4, scoped, tag = 'scoped memory for gru_memory_updater.1']
    #allocation4 [shape = 's32[1]{0}', space=sflag, size = 0x4, scoped, tag = 'scoped memory for gru_memory_updater.1']
    #allocation5 [shape = 'u8[4096]{0}', space=vmem, size = 0x1000, scoped, tag = 'input window, operand 3, single buffered']
    #allocation6 [shape = 's32[1]{0}', space=sflag, size = 0x4, scoped, tag = 'scoped memory for gru_memory_updater.1']
    #allocation7 [shape = 'u8[512]{0}', space=vmem, size = 0x400, scoped, tag = 'input window, operand 4, single buffered']
    #allocation8 [shape = 'u8[512]{0}', space=vmem, size = 0x400, scoped, tag = 'input window, operand 5, single buffered']
    #allocation9 [shape = 's32[1]{0}', space=sflag, size = 0x4, scoped, tag = 'scoped memory for gru_memory_updater.1']
    #allocation10 [shape = 'u8[20480]{0}', space=vmem, size = 0x5000, scoped, tag = 'input window, operand 6, single buffered']
    #allocation11 [shape = 'u8[2048]{0}', space=vmem, size = 0x800, scoped, tag = 'input window, operand 7, single buffered']
    #allocation12 [shape = 's32[1]{0}', space=sflag, size = 0x4, scoped, tag = 'scoped memory for gru_memory_updater.1']
    #allocation13 [shape = 'u8[512]{0}', space=vmem, size = 0x400, scoped, tag = 'input window, operand 9, single buffered']
    #allocation14 [shape = 'u8[4096]{0}', space=vmem, size = 0x1000, scoped, tag = 'input window, operand 10, single buffered']
    #allocation15 [shape = 's32[1]{0}', space=sflag, size = 0x4, scoped, tag = 'scoped memory for gru_memory_updater.1']
    #allocation16 [shape = 'u8[512]{0}', space=vmem, size = 0x400, scoped, tag = 'input window, operand 11, single buffered']
    #allocation17 [shape = 'u8[4096]{0}', space=vmem, size = 0x1000, scoped, tag = 'output window, operand 0, single buffered']
    #allocation18 [shape = 'u8[4096]{0}', space=vmem, size = 0x1000, scoped, tag = 'output window, operand 1, single buffered']
    #allocation19 [shape = 's32[1]{0}', space=sflag, size = 0x4, scoped, tag = 'scoped memory for gru_memory_updater.1']
    %19 = vsyncpa [#allocation3], 0
    %20 = vsyncpa [#allocation6], 0
    %21 = vsyncpa [#allocation9], 0
    %22 = vsyncpa [#allocation12], 0
    %23 = vsyncpa [#allocation15], 0
    %24 = vsyncpa [#allocation4], 0
    %25 = vsyncpa [#allocation19], 0
    // Predicated region
    $region2: #{gru_memory_updater.1} parent=1 // pred_check
      _
    $region3: #{gru_memory_updater.1} parent=1 // pred_check_branch
      %27 = sbr.rel (0) target = $region5
    $region4: #{gru_memory_updater.1} parent=1 // pred_region
      _
    $region5: #{gru_memory_updater.1} parent=1 // pred_fallthru
      _
    // Predicated region
    $region6: #{gru_memory_updater.1} parent=1 // pred_check
      _
    $region7: #{gru_memory_updater.1} parent=1 // pred_check_branch
      %29 = sbr.rel (0) target = $region9
    $region8: #{gru_memory_updater.1} parent=1 // pred_region
      _
    $region9: #{gru_memory_updater.1} parent=1 // pred_fallthru
      _
    // Predicated region
    $region10: #{gru_memory_updater.1} parent=1 // pred_check
      _
    $region11: #{gru_memory_updater.1} parent=1 // pred_check_branch
      %31 = sbr.rel (0) target = $region13
    $region12: #{gru_memory_updater.1} parent=1 // pred_region
      %33 = vsyncadd [#allocation3], 0
      %s34 = sshll.u32 %s2, 4
      %s35 = int_to_ptr.hbm [resolvable:$true] %s34
      %s36 = sshll.u32 [#allocation2], 4
      %s37 = int_to_ptr.vmem [resolvable:$true] %s36
      %42 = dma.hbm_to_vmem [thread:$0]  %s35, 128, %s37, [#allocation3], 64, 64, 4
    $region13: #{gru_memory_updater.1} parent=1 // pred_fallthru
      _
    // Predicated region
    $region14: #{gru_memory_updater.1} parent=1 // pred_check
      _
    $region15: #{gru_memory_updater.1} parent=1 // pred_check_branch
      %44 = sbr.rel (0) target = $region17
    $region16: #{gru_memory_updater.1} parent=1 // pred_region
      %46 = vsyncadd [#allocation6], 0
      %s47 = sshll.u32 %s3, 4
      %s48 = int_to_ptr.hbm [resolvable:$true] %s47
      %s49 = sshll.u32 [#allocation5], 4
      %s50 = int_to_ptr.vmem [resolvable:$true] %s49
      %55 = dma.hbm_to_vmem [thread:$0]  %s48, 128, %s50, [#allocation6], 64, 64, 4
    $region17: #{gru_memory_updater.1} parent=1 // pred_fallthru
      _
    // Predicated region
    $region18: #{gru_memory_updater.1} parent=1 // pred_check
      _
    $region19: #{gru_memory_updater.1} parent=1 // pred_check_branch
      %57 = sbr.rel (0) target = $region21
    $region20: #{gru_memory_updater.1} parent=1 // pred_region
      %59 = vsyncadd [#allocation6], 0
      %s61 = sshll.u32 %s4, 4
      %s62 = int_to_ptr.hbm [resolvable:$true] %s61
      %s63 = sshll.u32 [#allocation7], 4
      %s64 = int_to_ptr.vmem [resolvable:$true] %s63
      %66 = dma.hbm_to_vmem [thread:$0]  %s62, 16, %s64, [#allocation6]
    $region21: #{gru_memory_updater.1} parent=1 // pred_fallthru
      _
    // Predicated region
    $region22: #{gru_memory_updater.1} parent=1 // pred_check
      _
    $region23: #{gru_memory_updater.1} parent=1 // pred_check_branch
      %68 = sbr.rel (0) target = $region25
    $region24: #{gru_memory_updater.1} parent=1 // pred_region
      %70 = vsyncadd [#allocation9], 0
      %s72 = sshll.u32 %s5, 4
      %s73 = int_to_ptr.hbm [resolvable:$true] %s72
      %s74 = sshll.u32 [#allocation8], 4
      %s75 = int_to_ptr.vmem [resolvable:$true] %s74
      %77 = dma.hbm_to_vmem [thread:$0]  %s73, 16, %s75, [#allocation9]
    $region25: #{gru_memory_updater.1} parent=1 // pred_fallthru
      _
    // Predicated region
    $region26: #{gru_memory_updater.1} parent=1 // pred_check
      _
    $region27: #{gru_memory_updater.1} parent=1 // pred_check_branch
      %79 = sbr.rel (0) target = $region29
    $region28: #{gru_memory_updater.1} parent=1 // pred_region
      %81 = vsyncadd [#allocation9], 0
      %s82 = sshll.u32 %s6, 4
      %s83 = int_to_ptr.hbm [resolvable:$true] %s82
      %s84 = sshll.u32 [#allocation10], 4
      %s85 = int_to_ptr.vmem [resolvable:$true] %s84
      %90 = dma.hbm_to_vmem [thread:$0]  %s83, 640, %s85, [#allocation9], 64, 64, 4
    $region29: #{gru_memory_updater.1} parent=1 // pred_fallthru
      _
    // Predicated region
    $region30: #{gru_memory_updater.1} parent=1 // pred_check
      _
    $region31: #{gru_memory_updater.1} parent=1 // pred_check_branch
      %92 = sbr.rel (0) target = $region33
    $region32: #{gru_memory_updater.1} parent=1 // pred_region
      %94 = vsyncadd [#allocation12], 0
      %s96 = sshll.u32 %s7, 4
      %s97 = int_to_ptr.hbm [resolvable:$true] %s96
      %s98 = sshll.u32 [#allocation11], 4
      %s99 = int_to_ptr.vmem [resolvable:$true] %s98
      %101 = dma.hbm_to_vmem [thread:$0]  %s97, 64, %s99, [#allocation12]
    $region33: #{gru_memory_updater.1} parent=1 // pred_fallthru
      _
    // Predicated region
    $region34: #{gru_memory_updater.1} parent=1 // pred_check
      _
    $region35: #{gru_memory_updater.1} parent=1 // pred_check_branch
      %103 = sbr.rel (0) target = $region37
    $region36: #{gru_memory_updater.1} parent=1 // pred_region
      _
    $region37: #{gru_memory_updater.1} parent=1 // pred_fallthru
      _
    // Predicated region
    $region38: #{gru_memory_updater.1} parent=1 // pred_check
      _
    $region39: #{gru_memory_updater.1} parent=1 // pred_check_branch
      %105 = sbr.rel (0) target = $region41
    $region40: #{gru_memory_updater.1} parent=1 // pred_region
      %107 = vsyncadd [#allocation12], 0
      %s109 = sshll.u32 %s9, 4
      %s110 = int_to_ptr.hbm [resolvable:$true] %s109
      %s111 = sshll.u32 [#allocation13], 4
      %s112 = int_to_ptr.vmem [resolvable:$true] %s111
      %114 = dma.hbm_to_vmem [thread:$0]  %s110, 16, %s112, [#allocation12]
    $region41: #{gru_memory_updater.1} parent=1 // pred_fallthru
      _
    // Predicated region
    $region42: #{gru_memory_updater.1} parent=1 // pred_check
      _
    $region43: #{gru_memory_updater.1} parent=1 // pred_check_branch
      %116 = sbr.rel (0) target = $region45
    $region44: #{gru_memory_updater.1} parent=1 // pred_region
      %118 = vsyncadd [#allocation15], 0
      %s119 = sshll.u32 %s10, 4
      %s120 = int_to_ptr.hbm [resolvable:$true] %s119
      %s121 = sshll.u32 [#allocation14], 4
      %s122 = int_to_ptr.vmem [resolvable:$true] %s121
      %127 = dma.hbm_to_vmem [thread:$0]  %s120, 128, %s122, [#allocation15], 64, 64, 4
    $region45: #{gru_memory_updater.1} parent=1 // pred_fallthru
      _
    // Predicated region
    $region46: #{gru_memory_updater.1} parent=1 // pred_check
      _
    $region47: #{gru_memory_updater.1} parent=1 // pred_check_branch
      %129 = sbr.rel (0) target = $region49
    $region48: #{gru_memory_updater.1} parent=1 // pred_region
      %131 = vsyncadd [#allocation15], 0
      %s133 = sshll.u32 %s11, 4
      %s134 = int_to_ptr.hbm [resolvable:$true] %s133
      %s135 = sshll.u32 [#allocation16], 4
      %s136 = int_to_ptr.vmem [resolvable:$true] %s135
      %138 = dma.hbm_to_vmem [thread:$0]  %s134, 16, %s136, [#allocation15]
    $region49: #{gru_memory_updater.1} parent=1 // pred_fallthru
      _
    // Predicated region
    $region50: #{gru_memory_updater.1} parent=1 // pred_check
      _
    $region51: #{gru_memory_updater.1} parent=1 // pred_check_branch
      %140 = sbr.rel (0) target = $region53
    $region52: #{gru_memory_updater.1} parent=1 // pred_region
      %142 = dma.done [#allocation3], 128
    $region53: #{gru_memory_updater.1} parent=1 // pred_fallthru
      _
    // Predicated region
    $region54: #{gru_memory_updater.1} parent=1 // pred_check
      _
    $region55: #{gru_memory_updater.1} parent=1 // pred_check_branch
      %144 = sbr.rel (0) target = $region57
    $region56: #{gru_memory_updater.1} parent=1 // pred_region
      %146 = dma.done [#allocation6], 128
    $region57: #{gru_memory_updater.1} parent=1 // pred_fallthru
      _
    // Predicated region
    $region58: #{gru_memory_updater.1} parent=1 // pred_check
      _
    $region59: #{gru_memory_updater.1} parent=1 // pred_check_branch
      %148 = sbr.rel (0) target = $region61
    $region60: #{gru_memory_updater.1} parent=1 // pred_region
      %150 = dma.done [#allocation6], 16
    $region61: #{gru_memory_updater.1} parent=1 // pred_fallthru
      _
    // Predicated region
    $region62: #{gru_memory_updater.1} parent=1 // pred_check
      _
    $region63: #{gru_memory_updater.1} parent=1 // pred_check_branch
      %152 = sbr.rel (0) target = $region65
    $region64: #{gru_memory_updater.1} parent=1 // pred_region
      %154 = dma.done [#allocation9], 16
    $region65: #{gru_memory_updater.1} parent=1 // pred_fallthru
      _
    // Predicated region
    $region66: #{gru_memory_updater.1} parent=1 // pred_check
      _
    $region67: #{gru_memory_updater.1} parent=1 // pred_check_branch
      %156 = sbr.rel (0) target = $region69
    $region68: #{gru_memory_updater.1} parent=1 // pred_region
      %158 = dma.done [#allocation9], 640
    $region69: #{gru_memory_updater.1} parent=1 // pred_fallthru
      _
    // Predicated region
    $region70: #{gru_memory_updater.1} parent=1 // pred_check
      _
    $region71: #{gru_memory_updater.1} parent=1 // pred_check_branch
      %160 = sbr.rel (0) target = $region73
    $region72: #{gru_memory_updater.1} parent=1 // pred_region
      %162 = dma.done [#allocation12], 64
    $region73: #{gru_memory_updater.1} parent=1 // pred_fallthru
      _
    // Predicated region
    $region74: #{gru_memory_updater.1} parent=1 // pred_check
      _
    $region75: #{gru_memory_updater.1} parent=1 // pred_check_branch
      %164 = sbr.rel (0) target = $region77
    $region76: #{gru_memory_updater.1} parent=1 // pred_region
      %166 = dma.done [#allocation12], 16
    $region77: #{gru_memory_updater.1} parent=1 // pred_fallthru
      _
    // Predicated region
    $region78: #{gru_memory_updater.1} parent=1 // pred_check
      _
    $region79: #{gru_memory_updater.1} parent=1 // pred_check_branch
      %168 = sbr.rel (0) target = $region81
    $region80: #{gru_memory_updater.1} parent=1 // pred_region
      %170 = dma.done [#allocation15], 128
    $region81: #{gru_memory_updater.1} parent=1 // pred_fallthru
      _
    // Predicated region
    $region82: #{gru_memory_updater.1} parent=1 // pred_check
      _
    $region83: #{gru_memory_updater.1} parent=1 // pred_check_branch
      %172 = sbr.rel (0) target = $region85
    $region84: #{gru_memory_updater.1} parent=1 // pred_region
      %174 = dma.done [#allocation15], 16
    $region85: #{gru_memory_updater.1} parent=1 // pred_fallthru
      _
    %v176 = vld [vmem:[%s0] sm:$0xff]
    %v177 = vld [vmem:[%s0 + $0x8] sm:$0xff]
    %v178 = vld [vmem:[#allocation7] sm:$0x1]
    %180 = vset.pattern.permute.xlu0 0
    %181 = vperm.xlu0 %180, %v176
    %v182 = vpop.permute.xlu0 %181
    %185 = vset.pattern.permute.xlu0 0
    %186 = vperm.xlu0 %185, %v177
    %v187 = vpop.permute.xlu0 %186
    %v190 = vperm.slane %v178, 0
    %v192 = vmul.f32 %v182, %v190
    %v193 = vmul.f32 %v187, %v190
    %v194 = vld [vmem:[#allocation8] sm:$0x1]
    %v196 = vperm.slane %v194, 0
    %v198 = vadd.f32 %v192, %v196
    %v199 = vadd.f32 %v193, %v196
    %v200 = vand.u32 2147483647, %v198
    %vm201 = vcmp.le.f32.partialorder %v200, 0.7853982
    %vm202 = vcmp.lt.s32.totalorder %v198, 0
    %v203 = vand.u32 %v198, 2139095040
    %v204 = vshrl.u32 %v203, 23
    %v205 = vsub.s32 %v204, 127
    %v206 = vand.u32 2147483647, %v198
    %v207 = vand.u32 %v206, 8388607
    %v208 = vor.u32 %v207, 8388608
    %v209 = vsub.s32 0, %v208
    %v210 = vadd.s32 %v205, 1
    %vm211 = vcmp.gt.s32.totalorder %v210, 0
    %v212 = vsel %vm211, %v210, 0
    %v213 = vshrl.u32 %v212, 5
    %v214 = vand.u32 %v212, 31
    %v215 = vsub.s32 32, %v214
    %v216 = vshrl.u32 683565275, %v215
    %v217 = vshll.u32 683565275, %v214
    %v218 = vshrl.u32 2475754826, %v215
    %v219 = vor.u32 %v217, %v218
    %v220 = vshll.u32 2475754826, %v214
    %v221 = vshrl.u32 2131351028, %v215
    %v222 = vor.u32 %v220, %v221
    %v223 = vshll.u32 2131351028, %v214
    %v224 = vshrl.u32 2102212464, %v215
    %v225 = vor.u32 %v223, %v224
    %v226 = vshll.u32 2102212464, %v214
    %v227 = vshrl.u32 920167782, %v215
    %v228 = vor.u32 %v226, %v227
    %v229 = vshll.u32 920167782, %v214
    %v230 = vshrl.u32 1326507024, %v215
    %v231 = vor.u32 %v229, %v230
    %vm232 = vcmp.lt.s32.totalorder %v213, 1
    %vm233 = vcmp.lt.s32.totalorder %v213, 2
    %vm234 = vcmp.lt.s32.totalorder %v213, 3
    %vm235 = vcmp.lt.s32.totalorder %v213, 4
    %v236 = vsel %vm232, %v216, %v219
    %v237 = vsel %vm235, %v225, 2102212464
    %v238 = vsel %vm234, %v222, %v237
    %v239 = vsel %vm233, %v236, %v238
    %v240 = vsel %vm232, %v219, %v222
    %v241 = vsel %vm235, %v228, 920167782
    %v242 = vsel %vm234, %v225, %v241
    %v243 = vsel %vm233, %v240, %v242
    %v244 = vsel %vm232, %v222, %v225
    %v245 = vsel %vm235, %v231, 1326507024
    %v246 = vsel %vm234, %v228, %v245
    %v247 = vsel %vm233, %v244, %v246
    %v248 = vshll.u32 %v208, 8
    %v249 = vand.u32 %v248, 65535
    %v250 = vshrl.u32 %v248, 16
    %v251 = vand.u32 %v247, 65535
    %v252 = vshrl.u32 %v247, 16
    %v253 = vmul.u32 %v249, %v251
    %v254 = vmul.u32 %v249, %v252
    %v255 = vmul.u32 %v250, %v251
    %v256 = vmul.u32 %v250, %v252
    %v257 = vshll.u32 %v254, 16
    %v258 = vshrl.u32 %v254, 16
    %v259 = vshll.u32 %v255, 16
    %v260 = vshrl.u32 %v255, 16
    %vm261 = vc.u32 %v253, %v257
    %v262 = vsel %vm261, 1, 0
    %v263 = vadd.s32 %v253, %v257
    %v264 = vadd.s32 %v256, %v262
    %vm265 = vc.u32 %v263, %v259
    %v266 = vsel %vm265, 1, 0
    %v267 = vadd.s32 %v263, %v259
    %v268 = vadd.s32 %v264, %v266
    %v269 = vadd.s32 %v268, %v258
    %v270 = vadd.s32 %v269, %v260
    %v271 = vand.u32 %v248, 65535
    %v272 = vshrl.u32 %v248, 16
    %v273 = vand.u32 %v243, 65535
    %v274 = vshrl.u32 %v243, 16
    %v275 = vmul.u32 %v271, %v273
    %v276 = vmul.u32 %v271, %v274
    %v277 = vmul.u32 %v272, %v273
    %v278 = vmul.u32 %v272, %v274
    %v279 = vshll.u32 %v276, 16
    %v280 = vshrl.u32 %v276, 16
    %v281 = vshll.u32 %v277, 16
    %v282 = vshrl.u32 %v277, 16
    %vm283 = vc.u32 %v275, %v279
    %v284 = vsel %vm283, 1, 0
    %v285 = vadd.s32 %v275, %v279
    %v286 = vadd.s32 %v278, %v284
    %vm287 = vc.u32 %v285, %v281
    %v288 = vsel %vm287, 1, 0
    %v289 = vadd.s32 %v285, %v281
    %v290 = vadd.s32 %v286, %v288
    %v291 = vadd.s32 %v290, %v280
    %v292 = vadd.s32 %v291, %v282
    %v293 = vmul.u32 %v248, %v239
    %v294 = vadd.s32 %v270, %v289
    %vm295 = vc.u32 %v270, %v289
    %v296 = vadd.s32 %v292, 1
    %v297 = vsel %vm295, %v296, %v292
    %v298 = vadd.s32 %v293, %v297
    %v299 = vadd.s32 %v298, 536870912
    %v300 = vshrl.u32 %v299, 30
    %v301 = vshll.u32 %v300, 30
    %v302 = vsub.s32 %v298, %v301
    %vm303 = vcmp.lt.s32.totalorder %v302, 0
    %v304 = vsub.s32 0, %v302
    %v305 = vsel %vm303, %v304, %v302
    %v306 = vclz %v305
    %v307 = vsub.s32 %v306, 2
    %vm308 = vcmp.gt.s32.totalorder 0, %v307
    %v309 = vsel %vm308, 0, %v307
    %v310 = vsub.s32 32, %v309
    %v311 = vshll.u32 %v302, %v309
    %v312 = vshrl.u32 %v294, %v310
    %v313 = vor.u32 %v311, %v312
    %v314 = vsub.s32 4294967266, %v309
    %v315 = vadd.s32 %v314, 127
    %v316 = vshll.u32 %v315, 23
    %v317 = vor.u32 4788187, %v316
    %v318 = vand.u32 2147483647, %v317
    %v320 = vcvt.s32.f32 %v313
    %v321 = vmul.f32 %v320, %v318
    %v322 = vxor.u32 %v321, 2147483648
    %v323 = vsel %vm202, %v322, %v321
    %v324 = vsub.s32 4, %v300
    %v325 = vsel %vm202, %v324, %v300
    %v326 = vsel %vm201, %v198, %v323
    %v327 = vsel %vm201, 0, %v325
    %v328 = vmul.f32 %v326, %v326
    %v329 = vmul.f32 %v328, -0.001358992
    %v330 = vadd.f32 %v329, 0.041655596
    %v331 = vmul.f32 %v328, %v330
    %v332 = vadd.f32 %v331, -0.4999988
    %v333 = vmul.f32 %v328, %v332
    %v334 = vadd.f32 1.0, %v333
    %v335 = vmul.f32 %v326, %v326
    %v336 = vmul.f32 %v335, -0.00019511016
    %v337 = vadd.f32 %v336, 0.008332121
    %v338 = vmul.f32 %v335, %v337
    %v339 = vadd.f32 %v338, -0.16666654
    %v340 = vmul.f32 %v335, %v339
    %v341 = vadd.f32 %v340, 1.0
    %v342 = vmul.f32 %v341, %v326
    %vm343 = vweird.f32 %v198
    %v344 = vand.u32 %v327, 3
    %vm345 = vcmp.lt.s32.totalorder %v344, 2
    %vm346 = vcmp.eq.s32.totalorder %v344, 0
    %v347 = vxor.u32 %v342, 2147483648
    %v348 = vsel %vm346, %v334, %v347
    %vm349 = vcmp.eq.s32.totalorder %v344, 2
    %v350 = vxor.u32 %v334, 2147483648
    %v351 = vsel %vm349, %v350, %v342
    %v352 = vsel %vm345, %v348, %v351
    %v353 = vsel %vm343, nan, %v352
    %v354 = vand.u32 2147483647, %v199
    %vm355 = vcmp.le.f32.partialorder %v354, 0.7853982
    %vm356 = vcmp.lt.s32.totalorder %v199, 0
    %v357 = vand.u32 %v199, 2139095040
    %v358 = vshrl.u32 %v357, 23
    %v359 = vsub.s32 %v358, 127
    %v360 = vand.u32 2147483647, %v199
    %v361 = vand.u32 %v360, 8388607
    %v362 = vor.u32 %v361, 8388608
    %v363 = vsub.s32 0, %v362
    %v364 = vadd.s32 %v359, 1
    %vm365 = vcmp.gt.s32.totalorder %v364, 0
    %v366 = vsel %vm365, %v364, 0
    %v367 = vshrl.u32 %v366, 5
    %v368 = vand.u32 %v366, 31
    %v369 = vsub.s32 32, %v368
    %v370 = vshrl.u32 683565275, %v369
    %v371 = vshll.u32 683565275, %v368
    %v372 = vshrl.u32 2475754826, %v369
    %v373 = vor.u32 %v371, %v372
    %v374 = vshll.u32 2475754826, %v368
    %v375 = vshrl.u32 2131351028, %v369
    %v376 = vor.u32 %v374, %v375
    %v377 = vshll.u32 2131351028, %v368
    %v378 = vshrl.u32 2102212464, %v369
    %v379 = vor.u32 %v377, %v378
    %v380 = vshll.u32 2102212464, %v368
    %v381 = vshrl.u32 920167782, %v369
    %v382 = vor.u32 %v380, %v381
    %v383 = vshll.u32 920167782, %v368
    %v384 = vshrl.u32 1326507024, %v369
    %v385 = vor.u32 %v383, %v384
    %vm386 = vcmp.lt.s32.totalorder %v367, 1
    %vm387 = vcmp.lt.s32.totalorder %v367, 2
    %vm388 = vcmp.lt.s32.totalorder %v367, 3
    %vm389 = vcmp.lt.s32.totalorder %v367, 4
    %v390 = vsel %vm386, %v370, %v373
    %v391 = vsel %vm389, %v379, 2102212464
    %v392 = vsel %vm388, %v376, %v391
    %v393 = vsel %vm387, %v390, %v392
    %v394 = vsel %vm386, %v373, %v376
    %v395 = vsel %vm389, %v382, 920167782
    %v396 = vsel %vm388, %v379, %v395
    %v397 = vsel %vm387, %v394, %v396
    %v398 = vsel %vm386, %v376, %v379
    %v399 = vsel %vm389, %v385, 1326507024
    %v400 = vsel %vm388, %v382, %v399
    %v401 = vsel %vm387, %v398, %v400
    %v402 = vshll.u32 %v362, 8
    %v403 = vand.u32 %v402, 65535
    %v404 = vshrl.u32 %v402, 16
    %v405 = vand.u32 %v401, 65535
    %v406 = vshrl.u32 %v401, 16
    %v407 = vmul.u32 %v403, %v405
    %v408 = vmul.u32 %v403, %v406
    %v409 = vmul.u32 %v404, %v405
    %v410 = vmul.u32 %v404, %v406
    %v411 = vshll.u32 %v408, 16
    %v412 = vshrl.u32 %v408, 16
    %v413 = vshll.u32 %v409, 16
    %v414 = vshrl.u32 %v409, 16
    %vm415 = vc.u32 %v407, %v411
    %v416 = vsel %vm415, 1, 0
    %v417 = vadd.s32 %v407, %v411
    %v418 = vadd.s32 %v410, %v416
    %vm419 = vc.u32 %v417, %v413
    %v420 = vsel %vm419, 1, 0
    %v421 = vadd.s32 %v417, %v413
    %v422 = vadd.s32 %v418, %v420
    %v423 = vadd.s32 %v422, %v412
    %v424 = vadd.s32 %v423, %v414
    %v425 = vand.u32 %v402, 65535
    %v426 = vshrl.u32 %v402, 16
    %v427 = vand.u32 %v397, 65535
    %v428 = vshrl.u32 %v397, 16
    %v429 = vmul.u32 %v425, %v427
    %v430 = vmul.u32 %v425, %v428
    %v431 = vmul.u32 %v426, %v427
    %v432 = vmul.u32 %v426, %v428
    %v433 = vshll.u32 %v430, 16
    %v434 = vshrl.u32 %v430, 16
    %v435 = vshll.u32 %v431, 16
    %v436 = vshrl.u32 %v431, 16
    %vm437 = vc.u32 %v429, %v433
    %v438 = vsel %vm437, 1, 0
    %v439 = vadd.s32 %v429, %v433
    %v440 = vadd.s32 %v432, %v438
    %vm441 = vc.u32 %v439, %v435
    %v442 = vsel %vm441, 1, 0
    %v443 = vadd.s32 %v439, %v435
    %v444 = vadd.s32 %v440, %v442
    %v445 = vadd.s32 %v444, %v434
    %v446 = vadd.s32 %v445, %v436
    %v447 = vmul.u32 %v402, %v393
    %v448 = vadd.s32 %v424, %v443
    %vm449 = vc.u32 %v424, %v443
    %v450 = vadd.s32 %v446, 1
    %v451 = vsel %vm449, %v450, %v446
    %v452 = vadd.s32 %v447, %v451
    %v453 = vadd.s32 %v452, 536870912
    %v454 = vshrl.u32 %v453, 30
    %v455 = vshll.u32 %v454, 30
    %v456 = vsub.s32 %v452, %v455
    %vm457 = vcmp.lt.s32.totalorder %v456, 0
    %v458 = vsub.s32 0, %v456
    %v459 = vsel %vm457, %v458, %v456
    %v460 = vclz %v459
    %v461 = vsub.s32 %v460, 2
    %vm462 = vcmp.gt.s32.totalorder 0, %v461
    %v463 = vsel %vm462, 0, %v461
    %v464 = vsub.s32 32, %v463
    %v465 = vshll.u32 %v456, %v463
    %v466 = vshrl.u32 %v448, %v464
    %v467 = vor.u32 %v465, %v466
    %v468 = vsub.s32 4294967266, %v463
    %v469 = vadd.s32 %v468, 127
    %v470 = vshll.u32 %v469, 23
    %v471 = vor.u32 4788187, %v470
    %v472 = vand.u32 2147483647, %v471
    %v474 = vcvt.s32.f32 %v467
    %v475 = vmul.f32 %v474, %v472
    %v476 = vxor.u32 %v475, 2147483648
    %v477 = vsel %vm356, %v476, %v475
    %v478 = vsub.s32 4, %v454
    %v479 = vsel %vm356, %v478, %v454
    %v480 = vsel %vm355, %v199, %v477
    %v481 = vsel %vm355, 0, %v479
    %v482 = vmul.f32 %v480, %v480
    %v483 = vmul.f32 %v482, -0.001358992
    %v484 = vadd.f32 %v483, 0.041655596
    %v485 = vmul.f32 %v482, %v484
    %v486 = vadd.f32 %v485, -0.4999988
    %v487 = vmul.f32 %v482, %v486
    %v488 = vadd.f32 1.0, %v487
    %v489 = vmul.f32 %v480, %v480
    %v490 = vmul.f32 %v489, -0.00019511016
    %v491 = vadd.f32 %v490, 0.008332121
    %v492 = vmul.f32 %v489, %v491
    %v493 = vadd.f32 %v492, -0.16666654
    %v494 = vmul.f32 %v489, %v493
    %v495 = vadd.f32 %v494, 1.0
    %v496 = vmul.f32 %v495, %v480
    %vm497 = vweird.f32 %v199
    %v498 = vand.u32 %v481, 3
    %vm499 = vcmp.lt.s32.totalorder %v498, 2
    %vm500 = vcmp.eq.s32.totalorder %v498, 0
    %v501 = vxor.u32 %v496, 2147483648
    %v502 = vsel %vm500, %v488, %v501
    %vm503 = vcmp.eq.s32.totalorder %v498, 2
    %v504 = vxor.u32 %v488, 2147483648
    %v505 = vsel %vm503, %v504, %v496
    %v506 = vsel %vm499, %v502, %v505
    %v507 = vsel %vm497, nan, %v506
    %v508 = vld [vmem:[#allocation2] sm:$0xf]
    %v509 = vld [vmem:[#allocation2 + $0x4] sm:$0xf]
    %v510 = vld [vmem:[%s1] sm:$0xf]
    %v511 = vld [vmem:[%s1 + $0x4] sm:$0xf]
    %v512 = vld [vmem:[#allocation10] sm:$0xf]
    %v513 = vld [vmem:[#allocation10 + $0x4] sm:$0xf]
    %v514 = vld [vmem:[#allocation10 + $0x8] sm:$0xf]
    %v515 = vld [vmem:[#allocation10 + $0xc] sm:$0xf]
    %v516 = vld [vmem:[#allocation10 + $0x10] sm:$0xf]
    %v517 = vld [vmem:[#allocation10 + $0x14] sm:$0xf]
    %v518 = vld [vmem:[#allocation10 + $0x18] sm:$0xf]
    %v519 = vld [vmem:[#allocation10 + $0x1c] sm:$0xf]
    %v520 = vld [vmem:[#allocation10 + $0x20] sm:$0xf]
    %v521 = vld [vmem:[#allocation10 + $0x24] sm:$0xf]
    %v522 = vpack.c.bf16 %v507, %v353
    %v523 = vld [vmem:[#allocation11] sm:$0xf]
    %vm524 = vcmask 64512
    %v526 = vsel %vm524, %v522, 0
    %vm528 = vcmask 1043456
    %v530 = vsel %vm528, %v523, 0
    %532 = vmatpush.bf16.msra.mxu0 0
    %533 = vmatpush.bf16.msra.mxu0 0
    %534 = vmatpush.bf16.msra.mxu0 0
    %535 = vmatpush.bf16.msra.mxu0 0
    %536 = vmatpush.bf16.msra.mxu0 0
    %537 = vmatpush.bf16.msra.mxu0 0
    %538 = vmatpush.bf16.msra.mxu0 0
    %539 = vmatpush.bf16.msra.mxu0 %v530
    %540 = vmatmul.bf16.gmra.mxu0 %v526
    %v541 = vpop.f32.mrf.mxu0
    %v542 = vadd.f32 0.0, %v541
    %v543 = vpop.f32.mrf.mxu0
    %v544 = vadd.f32 0.0, %v543
    %545 = vdwg.mxu0
    %v548 = vunpack.c.l.b16 %v510
    %v549 = vunpack.c.l.b16 %v511
    %v550 = vpack.c.b16 %v549, %v548
    %v561 = vunpack.c.l.b16 %v512
    %v562 = vunpack.c.l.b16 %v513
    %v563 = vunpack.c.l.b16 %v514
    %v564 = vunpack.c.l.b16 %v515
    %v565 = vunpack.c.l.b16 %v516
    %v566 = vunpack.c.l.b16 %v517
    %v567 = vunpack.c.l.b16 %v518
    %v568 = vunpack.c.l.b16 %v519
    %v569 = vunpack.c.l.b16 %v520
    %v570 = vunpack.c.l.b16 %v521
    %v571 = vpack.c.b16 %v562, %v561
    %v572 = vpack.c.b16 %v564, %v563
    %v573 = vpack.c.b16 %v566, %v565
    %v574 = vpack.c.b16 %v568, %v567
    %v575 = vpack.c.b16 %v570, %v569
    %vm581 = vcmask 654336
    %v583 = vsel %vm581, %v550, 0
    %585 = vmatpush.bf16.msra.mxu0 0
    %586 = vmatpush.bf16.msra.mxu0 0
    %587 = vmatpush.bf16.msra.mxu0 0
    %588 = vmatpush.bf16.msra.mxu0 %v575
    %589 = vmatpush.bf16.msra.mxu0 %v574
    %590 = vmatpush.bf16.msra.mxu0 %v573
    %591 = vmatpush.bf16.msra.mxu0 %v572
    %592 = vmatpush.bf16.msra.mxu0 %v571
    %593 = vmatmul.bf16.gmra.mxu0 %v583
    %v594 = vpop.f32.mrf.mxu0
    %v595 = vadd.f32 %v542, %v594
    %v596 = vpop.f32.mrf.mxu0
    %v597 = vadd.f32 %v544, %v596
    %598 = vdwg.mxu0
    %v599 = vld [vmem:[%s8] sm:$0xf]
    %v600 = vld [vmem:[%s8 + $0x4] sm:$0xf]
    %v601 = vld [vmem:[%s8 + $0x8] sm:$0xf]
    %v602 = vld [vmem:[%s8 + $0xc] sm:$0xf]
    %v605 = vunpack.c.l.b16 %v508
    %v606 = vunpack.c.l.b16 %v509
    %v607 = vpack.c.b16 %v606, %v605
    %v612 = vunpack.c.l.b16 %v599
    %v613 = vunpack.c.l.b16 %v600
    %v614 = vunpack.c.l.b16 %v601
    %v615 = vunpack.c.l.b16 %v602
    %v616 = vpack.c.b16 %v613, %v612
    %v617 = vpack.c.b16 %v615, %v614
    %vm620 = vcmask 261120
    %v622 = vsel %vm620, %v607, 0
    %624 = vmatpush.bf16.msra.mxu0 0
    %625 = vmatpush.bf16.msra.mxu0 0
    %626 = vmatpush.bf16.msra.mxu0 0
    %627 = vmatpush.bf16.msra.mxu0 0
    %628 = vmatpush.bf16.msra.mxu0 0
    %629 = vmatpush.bf16.msra.mxu0 0
    %630 = vmatpush.bf16.msra.mxu0 %v617
    %631 = vmatpush.bf16.msra.mxu0 %v616
    %632 = vmatmul.bf16.gmra.mxu0 %v622
    %v633 = vpop.f32.mrf.mxu0
    %v634 = vadd.f32 0.0, %v633
    %v635 = vpop.f32.mrf.mxu0
    %v636 = vadd.f32 0.0, %v635
    %637 = vdwg.mxu0
    %v638 = vadd.f32 %v595, %v634
    %v639 = vadd.f32 %v597, %v636
    %v640 = vld [vmem:[#allocation13] sm:$0x1]
    %v642 = vperm.slane %v640, 0
    %v644 = vadd.f32 %v638, %v642
    %v645 = vadd.f32 %v639, %v642
    %v646 = vxor.u32 %v644, 2147483648
    %v647 = vxor.u32 %v645, 2147483648
    %v648 = vmul.f32 %v646, 1.442695
    %v649 = vpow.pop %v648
    %v650 = vmul.f32 %v647, 1.442695
    %v651 = vpow.pop %v650
    %v652 = vadd.f32 %v649, 1.0
    %v653 = vadd.f32 %v651, 1.0
    %v654 = vrcp.pop %v652
    %v655 = vmul.f32 %v652, %v654
    %v656 = vsub.f32 1.0, %v655
    %v657 = vmul.f32 %v654, %v656
    %v658 = vadd.f32 %v654, %v657
    %vm659 = vweird.f32 %v652
    %vm660 = vweird.f32 %v654
    %vm661 = vmor %vm659, %vm660
    %v662 = vsel %vm661, %v654, %v658
    %v663 = vand.u32 2147483647, %v652
    %vm664 = vcmp.eq.f32.partialorder %v663, 8.507059e+37
    %v665 = vand.u32 %v652, 2147483648
    %v666 = vor.u32 1.1754944e-38, %v665
    %v667 = vsel %vm664, %v666, %v662
    %v668 = vmul.f32 1.0, %v667
    %v669 = vrcp.pop %v653
    %v670 = vmul.f32 %v653, %v669
    %v671 = vsub.f32 1.0, %v670
    %v672 = vmul.f32 %v669, %v671
    %v673 = vadd.f32 %v669, %v672
    %vm674 = vweird.f32 %v653
    %vm675 = vweird.f32 %v669
    %vm676 = vmor %vm674, %vm675
    %v677 = vsel %vm676, %v669, %v673
    %v678 = vand.u32 2147483647, %v653
    %vm679 = vcmp.eq.f32.partialorder %v678, 8.507059e+37
    %v680 = vand.u32 %v653, 2147483648
    %v681 = vor.u32 1.1754944e-38, %v680
    %v682 = vsel %vm679, %v681, %v677
    %v683 = vmul.f32 1.0, %v682
    %686 = vrot.lane.b32.xlu0 %v644, 32
    %v687 = vpop.permute.xlu0 %686
    %688 = vrot.lane.b32.xlu0 %v645, 32
    %v689 = vpop.permute.xlu0 %688
    %v692 = vmul.f32 %v668, %v687
    %v693 = vmul.f32 %v683, %v689
    %696 = vrot.lane.b32.xlu0 %v692, 64
    %v697 = vpop.permute.xlu0 %696
    %698 = vrot.lane.b32.xlu0 %v693, 64
    %v699 = vpop.permute.xlu0 %698
    %v702 = vadd.f32 %v644, %v697
    %v703 = vadd.f32 %v645, %v699
    %v704 = vtanh.pop %v702
    %v705 = vtanh.pop %v703
    %v706 = vunpack.c.l.bf16 %v508
    %v707 = vunpack.c.l.bf16 %v509
    %v708 = vsub.f32 1.0, %v668
    %v709 = vsub.f32 1.0, %v683
    %712 = vrot.lane.b32.xlu0 %v704, 96
    %v713 = vpop.permute.xlu0 %712
    %714 = vrot.lane.b32.xlu0 %v705, 96
    %v715 = vpop.permute.xlu0 %714
    %v718 = vmul.f32 %v708, %v713
    %v719 = vmul.f32 %v709, %v715
    %722 = vrot.lane.b32.xlu0 %v706, 32
    %v723 = vpop.permute.xlu0 %722
    %724 = vrot.lane.b32.xlu0 %v707, 32
    %v725 = vpop.permute.xlu0 %724
    %v728 = vmul.f32 %v668, %v723
    %v729 = vmul.f32 %v683, %v725
    %v730 = vadd.f32 %v718, %v728
    %v731 = vadd.f32 %v719, %v729
    %v732 = vpack.c.bf16 %v730, %v730
    %v733 = vpack.c.bf16 %v731, %v731
    %736 = vrot.lane.b32.xlu0 %v732, 96
    %v737 = vpop.permute.xlu0 %736
    %738 = vrot.lane.b32.xlu0 %v733, 96
    %v739 = vpop.permute.xlu0 %738
    %vm742 = vcmask 257024
    %743 = vst.msk [vmem:[#allocation17] sm:$0xf] %vm742, %v737
    %744 = vst.msk [vmem:[#allocation17 + $0x4] sm:$0xf] %vm742, %v739
    %v745 = vld [vmem:[#allocation5] sm:$0xf]
    %v746 = vld [vmem:[#allocation5 + $0x4] sm:$0xf]
    %v747 = vld [vmem:[#allocation14] sm:$0xf]
    %v748 = vld [vmem:[#allocation14 + $0x4] sm:$0x3]
    %v749 = vld [vmem:[#allocation16] sm:$0x1]
    %v751 = vperm.slane %v749, 0
    %v755 = vunpack.c.l.b16 %v745
    %v756 = vunpack.c.l.b16 %v746
    %v757 = vpack.c.b16 %v756, %v755
    %v760 = vunpack.c.l.b16 %v747
    %v761 = vunpack.c.l.b16 %v748
    %v762 = vpack.c.b16 %v761, %v760
    %vm763 = vcmask 97280
    %v765 = vsel %vm763, %v757, 0
    %vm767 = vcmask 1045504
    %v769 = vsel %vm767, %v762, 0
    %771 = vmatpush.bf16.msra.mxu0 0
    %772 = vmatpush.bf16.msra.mxu0 0
    %773 = vmatpush.bf16.msra.mxu0 0
    %774 = vmatpush.bf16.msra.mxu0 0
    %775 = vmatpush.bf16.msra.mxu0 0
    %776 = vmatpush.bf16.msra.mxu0 0
    %777 = vmatpush.bf16.msra.mxu0 0
    %778 = vmatpush.bf16.msra.mxu0 %v769
    %779 = vmatmul.bf16.gmra.mxu0 %v765
    %v780 = vpop.f32.mrf.mxu0
    %v781 = vadd.f32 %v751, %v780
    %v782 = vpop.f32.mrf.mxu0
    %v783 = vadd.f32 %v751, %v782
    %784 = vdwg.mxu0
    %787 = vrot.lane.b32.xlu0 %v781, 32
    %v788 = vpop.permute.xlu0 %787
    %789 = vrot.lane.b32.xlu0 %v783, 32
    %v790 = vpop.permute.xlu0 %789
    %v793 = vadd.f32 %v730, %v788
    %v794 = vadd.f32 %v731, %v790
    %v795 = vpack.c.bf16 %v793, %v793
    %v796 = vpack.c.bf16 %v794, %v794
    %799 = vrot.lane.b32.xlu0 %v795, 96
    %v800 = vpop.permute.xlu0 %799
    %801 = vrot.lane.b32.xlu0 %v796, 96
    %v802 = vpop.permute.xlu0 %801
    %805 = vst.msk [vmem:[#allocation18] sm:$0xf] %vm742, %v800
    %806 = vst.msk [vmem:[#allocation18 + $0x4] sm:$0xf] %vm742, %v802
    // Predicated region
    $region86: #{gru_memory_updater.1} parent=1 // pred_check
      _
    $region87: #{gru_memory_updater.1} parent=1 // pred_check_branch
      %808 = sbr.rel (0) target = $region89
    $region88: #{gru_memory_updater.1} parent=1 // pred_region
      %810 = vsyncadd [#allocation4], 0
      %s811 = sshll.u32 [#allocation17], 4
      %s812 = int_to_ptr.vmem [resolvable:$true] %s811
      %s813 = sshll.u32 %s12, 4
      %s814 = int_to_ptr.hbm [resolvable:$true] %s813
      %819 = dma.vmem_to_hbm [thread:$0]  %s812, 128, %s814, [#allocation4], 64, 64, 4
    $region89: #{gru_memory_updater.1} parent=1 // pred_fallthru
      _
    // Predicated region
    $region90: #{gru_memory_updater.1} parent=1 // pred_check
      _
    $region91: #{gru_memory_updater.1} parent=1 // pred_check_branch
      %821 = sbr.rel (0) target = $region93
    $region92: #{gru_memory_updater.1} parent=1 // pred_region
      %823 = vsyncadd [#allocation19], 0
      %s824 = sshll.u32 [#allocation18], 4
      %s825 = int_to_ptr.vmem [resolvable:$true] %s824
      %s826 = sshll.u32 %s13, 4
      %s827 = int_to_ptr.hbm [resolvable:$true] %s826
      %832 = dma.vmem_to_hbm [thread:$0]  %s825, 128, %s827, [#allocation19], 64, 64, 4
    $region93: #{gru_memory_updater.1} parent=1 // pred_fallthru
      _
    // Predicated region
    $region94: #{gru_memory_updater.1} parent=1 // pred_check
      _
    $region95: #{gru_memory_updater.1} parent=1 // pred_check_branch
      %834 = sbr.rel (0) target = $region97
    $region96: #{gru_memory_updater.1} parent=1 // pred_region
      %836 = dma.done [#allocation4], 128
    $region97: #{gru_memory_updater.1} parent=1 // pred_fallthru
      _
    // Predicated region
    $region98: #{gru_memory_updater.1} parent=1 // pred_check
      _
    $region99: #{gru_memory_updater.1} parent=1 // pred_check_branch
      %838 = sbr.rel (0) target = $region101
    $region100: #{gru_memory_updater.1} parent=1 // pred_region
      %840 = dma.done [#allocation19], 128
    $region101: #{gru_memory_updater.1} parent=1 // pred_fallthru
      _
    %841 = vsyncpa [#allocation3], 1
    %842 = vsyncpa [#allocation6], 1
    %843 = vsyncpa [#allocation9], 1
    %844 = vsyncpa [#allocation12], 1
    %845 = vsyncpa [#allocation15], 1
    %846 = vsyncpa [#allocation4], 1
    %847 = vsyncpa [#allocation19], 1

</llo_original>
